<compile_context>
chip_gen: v7x
topology: tpu7x:2x2x1
jax: 0.10.0
libtpu: 0.0.40
codegen_flags: <defaults>
</compile_context>

<pallas_src>
import functools

import jax
import jax.numpy as jnp
from jax.experimental import pallas as pl
from jax.experimental.pallas import tpu as pltpu


IN_FEATURES = 28 * 28        # 784
OUT_FEATURES = 10
OUT_PAD = 16                 # HBM-visible width of spike / v state
LANE_PAD = 128               # lane-dense matmul width inside the kernel
V_THRESHOLD = 1.0
V_RESET = 0.0
DEFAULT_BATCH_TILE = 4096    # bf16 x tile ~6.1 MiB; x2 buffers + outputs
                             # ~16 MiB, fits every generation's scoped VMEM.


def _round_up(x, m):
    return ((x + m - 1) // m) * m


def _cdiv(a, b):
    return -(-a // b)


def _lif_update(cur16, v_prev16, inv_tau):
    """decay_input=True charge, heaviside fire, hard reset (all f32, 16 lanes)."""
    v = v_prev16 + (cur16 - (v_prev16 - V_RESET)) * inv_tau
    spiked = v >= V_THRESHOLD
    v_next = jnp.where(spiked, V_RESET, v)
    return spiked, v_next


def _snn_kernel(x_ref, w_ref, v_ref, spike_ref, v_next_ref, *, inv_tau):
    """Fused Linear (bf16 MXU, f32 acc) + LIF update; stateful path."""
    cur = jnp.dot(x_ref[...], w_ref[...],
                  preferred_element_type=jnp.float32,
                  precision=jax.lax.Precision.DEFAULT)        # (tb, 128) f32
    spiked, v_next = _lif_update(cur[:, :OUT_PAD], v_ref[...], inv_tau)
    spike_ref[...] = spiked.astype(spike_ref.dtype)           # masked 16-lane store
    v_next_ref[...] = v_next


def _snn_kernel_fresh(x_ref, w_ref, spike_ref, v_next_ref, *, inv_tau):
    """Fast path for fresh (all-zero) membrane state: no v_prev HBM read."""
    cur = jnp.dot(x_ref[...], w_ref[...],
                  preferred_element_type=jnp.float32,
                  precision=jax.lax.Precision.DEFAULT)        # (tb, 128) f32
    v = cur[:, :OUT_PAD] * inv_tau                            # v_prev == v_reset == 0
    spiked = v >= V_THRESHOLD
    spike_ref[...] = spiked.astype(spike_ref.dtype)
    v_next_ref[...] = jnp.where(spiked, V_RESET, v)


def snn_forward(x, weight, v_prev=None, *, tau, batch_tile=DEFAULT_BATCH_TILE):
    """x: (B, 1, 28, 28) or (B, 28, 28); weight: (10, 784) PyTorch layout;
    v_prev: optional (B, 10) membrane state (None == fresh/reset state).
    Returns (spike_f32, v_next_f32), each (B, 10)."""
    b = x.shape[0]
    # Flatten + bf16 cast (glue): halves the dominant x HBM stream.
    x_flat = x.reshape(b, IN_FEATURES).astype(jnp.bfloat16)

    # (10, 784) PyTorch layout -> (784, 128) transposed + zero-padded lanes, bf16.
    w = jnp.zeros((IN_FEATURES, LANE_PAD), jnp.bfloat16)
    w = w.at[:, :OUT_FEATURES].set(weight.astype(jnp.bfloat16).T)

    # Batch tile: multiple of 16 (bf16 sublane packing), capped by batch_tile,
    # and chosen so the parallel batch axis has >= 2 steps when b allows
    # (keeps both v7x TensorCores busy).
    tb = max(16, min(batch_tile, _round_up(_cdiv(b, 2), 16)))
    b_pad = _round_up(b, tb)
    if b_pad != b:
        x_flat = jnp.pad(x_flat, ((0, b_pad - b), (0, 0)))

    grid = (b_pad // tb,)
    x_spec = pl.BlockSpec((tb, IN_FEATURES), lambda i: (i, 0))
    w_spec = pl.BlockSpec((IN_FEATURES, LANE_PAD), lambda i: (0, 0))
    v_spec = pl.BlockSpec((tb, OUT_PAD), lambda i: (i, 0))
    out_specs = (
        pl.BlockSpec((tb, OUT_PAD), lambda i: (i, 0)),   # spike (bf16, 0/1 lossless)
        pl.BlockSpec((tb, OUT_PAD), lambda i: (i, 0)),   # v_next (f32)
    )
    out_shape = (
        jax.ShapeDtypeStruct((b_pad, OUT_PAD), jnp.bfloat16),
        jax.ShapeDtypeStruct((b_pad, OUT_PAD), jnp.float32),
    )
    cparams = pltpu.CompilerParams(
        dimension_semantics=("parallel",),      # shard batch across TCs (v7x)
        vmem_limit_bytes=40 * 1024 * 1024,      # tb=4096 uses ~16 MiB; headroom
    )

    if v_prev is None:
        kernel = functools.partial(_snn_kernel_fresh, inv_tau=1.0 / float(tau))
        spike_pad, v_next_pad = pl.pallas_call(
            kernel,
            grid=grid,
            in_specs=[x_spec, w_spec],
            out_specs=out_specs,
            out_shape=out_shape,
            compiler_params=cparams,
        )(x_flat, w)
    else:
        v_padded = jnp.zeros((b_pad, OUT_PAD), jnp.float32)
        v_padded = v_padded.at[:b, :OUT_FEATURES].set(v_prev.astype(jnp.float32))
        kernel = functools.partial(_snn_kernel, inv_tau=1.0 / float(tau))
        spike_pad, v_next_pad = pl.pallas_call(
            kernel,
            grid=grid,
            in_specs=[x_spec, w_spec, v_spec],
            out_specs=out_specs,
            out_shape=out_shape,
            # v_padded is a fresh wrapper-local array, safe to donate/alias.
            input_output_aliases={2: 1},
            compiler_params=cparams,
        )(x_flat, w, v_padded)

    return (spike_pad[:b, :OUT_FEATURES].astype(jnp.float32),
            v_next_pad[:b, :OUT_FEATURES])


def snn_reference(x, weight, v_prev, *, tau):
    """Pure-JAX reference matching the PyTorch/spikingjelly semantics, using
    the same bf16-quantized inputs as the kernel (products are then exact; only
    accumulation order can differ).  Returns (spike, v_next, v_pre_reset)."""
    b = x.shape[0]
    xq = x.reshape(b, IN_FEATURES).astype(jnp.bfloat16).astype(jnp.float32)
    wq = weight.astype(jnp.bfloat16).astype(jnp.float32)
    cur = jnp.dot(xq, wq.T, preferred_element_type=jnp.float32,
                  precision=jax.lax.Precision.HIGHEST)
    if v_prev is None:
        v_prev = jnp.zeros((b, OUT_FEATURES), jnp.float32)
    v = v_prev + (cur - (v_prev - V_RESET)) * (1.0 / float(tau))
    spike = (v >= V_THRESHOLD).astype(jnp.float32)
    v_next = jnp.where(spike != 0.0, V_RESET, v)
    return spike, v_next, v


def _check(spike, v_next, ref_spike, ref_v_next, ref_v_pre, tag):
    # A spike is only allowed to differ from the reference when the reference
    # membrane potential sits within accumulation-order error of the threshold.
    near_thresh = jnp.abs(ref_v_pre - V_THRESHOLD) < 5e-3
    spike_ok = jnp.where(near_thresh, True, spike == ref_spike)
    assert bool(jnp.all(spike_ok)), f"{tag}: spike mismatch vs reference"
    v_ok = jnp.where(near_thresh, True,
                     jnp.isclose(v_next, ref_v_next, atol=1e-3))
    assert bool(jnp.all(v_ok)), f"{tag}: membrane potential mismatch"


if __name__ == "__main__":
    tau = 2.0
    batch = 8

    key = jax.random.PRNGKey(0)
    kx, kw, kv = jax.random.split(key, 3)

    # Deterministic synthetic inputs / parameters (no checkpoint loading).
    x = jax.random.normal(kx, (batch, 1, 28, 28), dtype=jnp.float32)
    # nn.Linear default init: U(-1/sqrt(fan_in), 1/sqrt(fan_in))
    bound = 1.0 / (IN_FEATURES ** 0.5)
    weight = jax.random.uniform(
        kw, (OUT_FEATURES, IN_FEATURES), minval=-bound, maxval=bound,
        dtype=jnp.float32)

    # --- fresh-state path (matches the module's forward from a reset LIF) ---
    spike, v_next = snn_forward(x, weight, tau=tau)
    spike = jax.block_until_ready(spike)
    v_next = jax.block_until_ready(v_next)
    assert spike.shape == (batch, OUT_FEATURES)
    assert v_next.shape == (batch, OUT_FEATURES)
    ref_spike, ref_v_next, ref_v_pre = snn_reference(x, weight, None, tau=tau)
    _check(spike, v_next, ref_spike, ref_v_next, ref_v_pre, "fresh")

    # --- stateful path (nonzero membrane potential carried in) ---
    v_init = 0.3 * jax.random.normal(kv, (batch, OUT_FEATURES), dtype=jnp.float32)
    spike2, v_next2 = snn_forward(x, weight, v_init, tau=tau)
    spike2 = jax.block_until_ready(spike2)
    v_next2 = jax.block_until_ready(v_next2)
    ref_spike2, ref_v_next2, ref_v_pre2 = snn_reference(x, weight, v_init, tau=tau)
    _check(spike2, v_next2, ref_spike2, ref_v_next2, ref_v_pre2, "stateful")

    print("KERNEL_OK")
</pallas_src>

<mosaic_0001>
module attributes {stable_mosaic.version = 11 : i64} {
  func.func @_snn_kernel_fresh(%arg0: i32, %arg1: memref<16x784xbf16, #tpu.memory_space<vmem>>, %arg2: memref<784x128xbf16, #tpu.memory_space<vmem>>, %arg3: memref<16x16xbf16, #tpu.memory_space<vmem>>, %arg4: memref<16x16xf32, #tpu.memory_space<vmem>>) attributes {dimension_semantics = [#tpu.dimension_semantics<parallel>], iteration_bounds = array<i64: 1>, scalar_prefetch = 0 : i64, scratch_operands = 0 : i64, tpu.core_type = #tpu.core_type<tc>, window_params = [{transform_indices = @transform_0, window_bounds = array<i64: 16, 784>}, {pipeline_mode = #tpu.pipeline_mode<synchronous>, transform_indices = @transform_1, window_bounds = array<i64: 784, 128>}, {transform_indices = @transform_2, window_bounds = array<i64: 16, 16>}, {transform_indices = @transform_3, window_bounds = array<i64: 16, 16>}]} {
    %c0 = arith.constant 0 : index
    %c0_0 = arith.constant 0 : index
    %0 = vector.load %arg1[%c0, %c0_0] : memref<16x784xbf16, #tpu.memory_space<vmem>>, vector<16x784xbf16>
    %c0_1 = arith.constant 0 : index
    %c0_2 = arith.constant 0 : index
    %1 = vector.load %arg2[%c0_1, %c0_2] : memref<784x128xbf16, #tpu.memory_space<vmem>>, vector<784x128xbf16>
    %cst = arith.constant dense<0.000000e+00> : vector<16x128xf32>
    %2 = tpu.matmul %0, %1, %cst {dimension_numbers = #tpu.dot_dimension_numbers<[1], [0], [0], [1], [0, 0, 1, 1], [], []>} : vector<16x784xbf16>, vector<784x128xbf16>, vector<16x128xf32> -> vector<16x128xf32>
    %3 = vector.extract_strided_slice %2 {offsets = [0, 0], sizes = [16, 16], strides = [1, 1]} : vector<16x128xf32> to vector<16x16xf32>
    %cst_3 = arith.constant 5.000000e-01 : f32
    %4 = vector.broadcast %cst_3 : f32 to vector<16x16xf32>
    %5 = arith.mulf %3, %4 : vector<16x16xf32>
    %cst_4 = arith.constant 1.000000e+00 : f32
    %6 = vector.broadcast %cst_4 : f32 to vector<16x16xf32>
    %7 = arith.cmpf oge, %5, %6 : vector<16x16xf32>
    %8 = arith.extui %7 : vector<16x16xi1> to vector<16x16xi32>
    %9 = arith.sitofp %8 : vector<16x16xi32> to vector<16x16xf32>
    %10 = arith.truncf %9 : vector<16x16xf32> to vector<16x16xbf16>
    %c0_5 = arith.constant 0 : index
    %c0_6 = arith.constant 0 : index
    %11 = vector.load %arg3[%c0_5, %c0_6] : memref<16x16xbf16, #tpu.memory_space<vmem>>, vector<16x16xbf16>
    tpu.vector_store %arg3[%c0_5, %c0_6], %10 {strides = array<i32>} : memref<16x16xbf16, #tpu.memory_space<vmem>>, vector<16x16xbf16>,
    %cst_7 = arith.constant 0.000000e+00 : f32
    %12 = vector.broadcast %cst_7 : f32 to vector<16x16xf32>
    %13 = arith.select %7, %12, %5 : vector<16x16xi1>, vector<16x16xf32>
    %c0_8 = arith.constant 0 : index
    %c0_9 = arith.constant 0 : index
    %14 = vector.load %arg4[%c0_8, %c0_9] : memref<16x16xf32, #tpu.memory_space<vmem>>, vector<16x16xf32>
    tpu.vector_store %arg4[%c0_8, %c0_9], %13 {strides = array<i32>} : memref<16x16xf32, #tpu.memory_space<vmem>>, vector<16x16xf32>,
    return
  }
  func.func @transform_0(%arg0: i32) -> (i32, i32) {
    %c0_i32 = arith.constant 0 : i32
    %c0_i32_0 = arith.constant 0 : i32
    return %arg0, %c0_i32 : i32, i32
  }
  func.func @transform_1(%arg0: i32) -> (i32, i32) {
    %c0_i32 = arith.constant 0 : i32
    %c0_i32_0 = arith.constant 0 : i32
    %c0_i32_1 = arith.constant 0 : i32
    return %c0_i32, %c0_i32_0 : i32, i32
  }
  func.func @transform_2(%arg0: i32) -> (i32, i32) {
    %c0_i32 = arith.constant 0 : i32
    %c0_i32_0 = arith.constant 0 : i32
    return %arg0, %c0_i32 : i32, i32
  }
  func.func @transform_3(%arg0: i32) -> (i32, i32) {
    %c0_i32 = arith.constant 0 : i32
    %c0_i32_0 = arith.constant 0 : i32
    return %arg0, %c0_i32 : i32, i32
  }
}

</mosaic_0001>

<llo_original>
// kernel: tpu_custom_call.1
$region0: #{tpu_custom_call.1}
  #allocation0 [shape = 'u32[]', space=smem, size = 0x4, offset = 0x4, fixed_abs, tag = 'smem constant byte address 0x4 - core index']
  #allocation1 [shape = 'u32[144,128]{1,0:T(1,128)}', space=vmem, size = 0x12000, scoped, tag = 'internal scratch']
  %s0 = inlined_call_operand.hbm [shape: bf16[16,784], index: 0, kind: input, shape index: {}]
  %s1 = inlined_call_operand.hbm [shape: bf16[784,128], index: 1, kind: input, shape index: {}]
  %s2 = inlined_call_operand.hbm [shape: bf16[16,16], index: 2, kind: output, shape index: {0}]
  %s3 = inlined_call_operand.hbm [shape: f32[16,16], index: 3, kind: output, shape index: {1}]
  %4 = xla_tuple %s2, %s3
  %s5 = sld [smem:[#allocation0]]
  $region34: #{tpu_custom_call.1} parent=0
    _
  %s7 = ssub.s32 1, %s5
  %s8 = scalar_select 0, %s7, %s5
  $region1: #{tpu_custom_call.1} parent=0
    #allocation2 [shape = 'u8[28672]{0}', space=vmem, size = 0x7000, scoped, tag = 'input window, operand 0, single buffered']
    #allocation3 [shape = 's32[1]{0}', space=sflag, size = 0x4, scoped, tag = 'scoped memory for tpu_custom_call.1']
    #allocation4 [shape = 's32[1]{0}', space=sflag, size = 0x4, scoped, tag = 'scoped memory for tpu_custom_call.1']
    #allocation5 [shape = 'u8[200704]{0}', space=vmem, size = 0x31000, scoped, tag = 'input window, operand 1, single buffered']
    #allocation6 [shape = 's32[1]{0}', space=sflag, size = 0x4, scoped, tag = 'scoped memory for tpu_custom_call.1']
    #allocation7 [shape = 'u8[4096]{0}', space=vmem, size = 0x1000, scoped, tag = 'output window, operand 0, single buffered']
    #allocation8 [shape = 'u8[8192]{0}', space=vmem, size = 0x2000, scoped, tag = 'output window, operand 1, single buffered']
    #allocation9 [shape = 's32[1]{0}', space=sflag, size = 0x4, scoped, tag = 'scoped memory for tpu_custom_call.1']
    %9 = vsyncpa [#allocation3], 0
    %10 = vsyncpa [#allocation6], 0
    %11 = vsyncpa [#allocation4], 0
    %12 = vsyncpa [#allocation9], 0
    // Predicated region
    $region2: #{tpu_custom_call.1} parent=1 // pred_check
      _
    $region3: #{tpu_custom_call.1} parent=1 // pred_check_branch
      %14 = sbr.rel (0) target = $region5
    $region4: #{tpu_custom_call.1} parent=1 // pred_region
      %s16 = ssub.s32 896, 896
      %17 = vsyncadd [#allocation3], %s16
      %s18 = sshll.u32 [#allocation2], 4
      %s19 = int_to_ptr.vmem [resolvable:$true] %s18
      %24 = dma.hbm_to_vmem [thread:$0]  %s0, 896, %s19, [#allocation3], 448, 448, 28
    $region5: #{tpu_custom_call.1} parent=1 // pred_fallthru
      _
    // Predicated region
    $region6: #{tpu_custom_call.1} parent=1 // pred_check
      _
    $region7: #{tpu_custom_call.1} parent=1 // pred_check_branch
      %26 = sbr.rel (0) target = $region9
    $region8: #{tpu_custom_call.1} parent=1 // pred_region
      %s28 = ssub.s32 6272, 6272
      %29 = vsyncadd [#allocation6], %s28
      %s30 = sshll.u32 [#allocation5], 4
      %s31 = int_to_ptr.vmem [resolvable:$true] %s30
      %36 = dma.hbm_to_vmem [thread:$0]  %s1, 6272, %s31, [#allocation6], 64, 64, 4
    $region9: #{tpu_custom_call.1} parent=1 // pred_fallthru
      _
    // Predicated region
    $region10: #{tpu_custom_call.1} parent=1 // pred_check
      _
    $region11: #{tpu_custom_call.1} parent=1 // pred_check_branch
      %38 = sbr.rel (0) target = $region13
    $region12: #{tpu_custom_call.1} parent=1 // pred_region
      %39 = dma.done [#allocation3], 896
    $region13: #{tpu_custom_call.1} parent=1 // pred_fallthru
      _
    // Predicated region
    $region14: #{tpu_custom_call.1} parent=1 // pred_check
      _
    $region15: #{tpu_custom_call.1} parent=1 // pred_check_branch
      %41 = sbr.rel (0) target = $region17
    $region16: #{tpu_custom_call.1} parent=1 // pred_region
      %42 = dma.done [#allocation6], 6272
    $region17: #{tpu_custom_call.1} parent=1 // pred_fallthru
      _
    %v44 = vld [vmem:[#allocation2] sm:$0xff]
    %v45 = vld [vmem:[#allocation2 + $0x8] sm:$0xff]
    %v46 = vld [vmem:[#allocation2 + $0x10] sm:$0xff]
    %v47 = vld [vmem:[#allocation2 + $0x18] sm:$0xf]
    %v48 = vld [vmem:[#allocation2 + $0x1c] sm:$0xff]
    %v49 = vld [vmem:[#allocation2 + $0x24] sm:$0xff]
    %v50 = vld [vmem:[#allocation2 + $0x2c] sm:$0xff]
    %v51 = vld [vmem:[#allocation2 + $0x34] sm:$0xf]
    %v52 = vld [vmem:[#allocation5] sm:$0xf]
    %v53 = vld [vmem:[#allocation5 + $0x4] sm:$0xf]
    %v54 = vld [vmem:[#allocation5 + $0x8] sm:$0xf]
    %v55 = vld [vmem:[#allocation5 + $0xc] sm:$0xf]
    %v56 = vld [vmem:[#allocation5 + $0x10] sm:$0xf]
    %v57 = vld [vmem:[#allocation5 + $0x14] sm:$0xf]
    %v58 = vld [vmem:[#allocation5 + $0x18] sm:$0xf]
    %v59 = vld [vmem:[#allocation5 + $0x1c] sm:$0xf]
    %v60 = vld [vmem:[#allocation5 + $0x20] sm:$0xf]
    %v61 = vld [vmem:[#allocation5 + $0x24] sm:$0xf]
    %v62 = vld [vmem:[#allocation5 + $0x28] sm:$0xf]
    %v63 = vld [vmem:[#allocation5 + $0x2c] sm:$0xf]
    %v64 = vld [vmem:[#allocation5 + $0x30] sm:$0xf]
    %v65 = vld [vmem:[#allocation5 + $0x34] sm:$0xf]
    %v66 = vld [vmem:[#allocation5 + $0x38] sm:$0xf]
    %v67 = vld [vmem:[#allocation5 + $0x3c] sm:$0xf]
    %v68 = vld [vmem:[#allocation5 + $0x40] sm:$0xf]
    %v69 = vld [vmem:[#allocation5 + $0x44] sm:$0xf]
    %v70 = vld [vmem:[#allocation5 + $0x48] sm:$0xf]
    %v71 = vld [vmem:[#allocation5 + $0x4c] sm:$0xf]
    %v72 = vld [vmem:[#allocation5 + $0x50] sm:$0xf]
    %v73 = vld [vmem:[#allocation5 + $0x54] sm:$0xf]
    %v74 = vld [vmem:[#allocation5 + $0x58] sm:$0xf]
    %v75 = vld [vmem:[#allocation5 + $0x5c] sm:$0xf]
    %v76 = vld [vmem:[#allocation5 + $0x60] sm:$0xf]
    %v77 = vld [vmem:[#allocation5 + $0x64] sm:$0xf]
    %v78 = vld [vmem:[#allocation5 + $0x68] sm:$0xf]
    %v79 = vld [vmem:[#allocation5 + $0x6c] sm:$0xf]
    %v80 = vld [vmem:[#allocation5 + $0x70] sm:$0xf]
    %v81 = vld [vmem:[#allocation5 + $0x74] sm:$0xf]
    %v82 = vld [vmem:[#allocation5 + $0x78] sm:$0xf]
    %v83 = vld [vmem:[#allocation5 + $0x7c] sm:$0xf]
    %v84 = vld [vmem:[#allocation5 + $0x80] sm:$0xf]
    %v85 = vld [vmem:[#allocation5 + $0x84] sm:$0xf]
    %v86 = vld [vmem:[#allocation5 + $0x88] sm:$0xf]
    %v87 = vld [vmem:[#allocation5 + $0x8c] sm:$0xf]
    %v88 = vld [vmem:[#allocation5 + $0x90] sm:$0xf]
    %v89 = vld [vmem:[#allocation5 + $0x94] sm:$0xf]
    %v90 = vld [vmem:[#allocation5 + $0x98] sm:$0xf]
    %v91 = vld [vmem:[#allocation5 + $0x9c] sm:$0xf]
    %v92 = vld [vmem:[#allocation5 + $0xa0] sm:$0xf]
    %v93 = vld [vmem:[#allocation5 + $0xa4] sm:$0xf]
    %v94 = vld [vmem:[#allocation5 + $0xa8] sm:$0xf]
    %v95 = vld [vmem:[#allocation5 + $0xac] sm:$0xf]
    %v96 = vld [vmem:[#allocation5 + $0xb0] sm:$0xf]
    %v97 = vld [vmem:[#allocation5 + $0xb4] sm:$0xf]
    %v98 = vld [vmem:[#allocation5 + $0xb8] sm:$0xf]
    %v99 = vld [vmem:[#allocation5 + $0xbc] sm:$0xf]
    %v100 = vld [vmem:[#allocation5 + $0xc0] sm:$0xf]
    %v101 = vld [vmem:[#allocation5 + $0xc4] sm:$0xf]
    %v102 = vld [vmem:[#allocation5 + $0xc8] sm:$0xf]
    %v103 = vld [vmem:[#allocation5 + $0xcc] sm:$0xf]
    %v104 = vld [vmem:[#allocation5 + $0xd0] sm:$0xf]
    %v105 = vld [vmem:[#allocation5 + $0xd4] sm:$0xf]
    %v106 = vld [vmem:[#allocation5 + $0xd8] sm:$0xf]
    %v107 = vld [vmem:[#allocation5 + $0xdc] sm:$0xf]
    %v108 = vld [vmem:[#allocation5 + $0xe0] sm:$0xf]
    %v109 = vld [vmem:[#allocation5 + $0xe4] sm:$0xf]
    %v110 = vld [vmem:[#allocation5 + $0xe8] sm:$0xf]
    %v111 = vld [vmem:[#allocation5 + $0xec] sm:$0xf]
    %v112 = vld [vmem:[#allocation5 + $0xf0] sm:$0xf]
    %v113 = vld [vmem:[#allocation5 + $0xf4] sm:$0xf]
    %v114 = vld [vmem:[#allocation5 + $0xf8] sm:$0xf]
    %v115 = vld [vmem:[#allocation5 + $0xfc] sm:$0xf]
    %v116 = vld [vmem:[#allocation5 + $0x100] sm:$0xf]
    %v117 = vld [vmem:[#allocation5 + $0x104] sm:$0xf]
    %v118 = vld [vmem:[#allocation5 + $0x108] sm:$0xf]
    %v119 = vld [vmem:[#allocation5 + $0x10c] sm:$0xf]
    %v120 = vld [vmem:[#allocation5 + $0x110] sm:$0xf]
    %v121 = vld [vmem:[#allocation5 + $0x114] sm:$0xf]
    %v122 = vld [vmem:[#allocation5 + $0x118] sm:$0xf]
    %v123 = vld [vmem:[#allocation5 + $0x11c] sm:$0xf]
    %v124 = vld [vmem:[#allocation5 + $0x120] sm:$0xf]
    %v125 = vld [vmem:[#allocation5 + $0x124] sm:$0xf]
    %v126 = vld [vmem:[#allocation5 + $0x128] sm:$0xf]
    %v127 = vld [vmem:[#allocation5 + $0x12c] sm:$0xf]
    %v128 = vld [vmem:[#allocation5 + $0x130] sm:$0xf]
    %v129 = vld [vmem:[#allocation5 + $0x134] sm:$0xf]
    %v130 = vld [vmem:[#allocation5 + $0x138] sm:$0xf]
    %v131 = vld [vmem:[#allocation5 + $0x13c] sm:$0xf]
    %v132 = vld [vmem:[#allocation5 + $0x140] sm:$0xf]
    %v133 = vld [vmem:[#allocation5 + $0x144] sm:$0xf]
    %v134 = vld [vmem:[#allocation5 + $0x148] sm:$0xf]
    %v135 = vld [vmem:[#allocation5 + $0x14c] sm:$0xf]
    %v136 = vld [vmem:[#allocation5 + $0x150] sm:$0xf]
    %v137 = vld [vmem:[#allocation5 + $0x154] sm:$0xf]
    %v138 = vld [vmem:[#allocation5 + $0x158] sm:$0xf]
    %v139 = vld [vmem:[#allocation5 + $0x15c] sm:$0xf]
    %v140 = vld [vmem:[#allocation5 + $0x160] sm:$0xf]
    %v141 = vld [vmem:[#allocation5 + $0x164] sm:$0xf]
    %v142 = vld [vmem:[#allocation5 + $0x168] sm:$0xf]
    %v143 = vld [vmem:[#allocation5 + $0x16c] sm:$0xf]
    %v144 = vld [vmem:[#allocation5 + $0x170] sm:$0xf]
    %v145 = vld [vmem:[#allocation5 + $0x174] sm:$0xf]
    %v146 = vld [vmem:[#allocation5 + $0x178] sm:$0xf]
    %v147 = vld [vmem:[#allocation5 + $0x17c] sm:$0xf]
    %v148 = vld [vmem:[#allocation5 + $0x180] sm:$0xf]
    %v149 = vld [vmem:[#allocation5 + $0x184] sm:$0xf]
    %v158 = vunpack.c.l.b16 %v44
    %v159 = vunpack.c.h.b16 %v44
    %v160 = vunpack.c.l.b16 %v45
    %v161 = vunpack.c.h.b16 %v45
    %v162 = vunpack.c.l.b16 %v46
    %v163 = vunpack.c.h.b16 %v46
    %v164 = vunpack.c.l.b16 %v47
    %v165 = vunpack.c.l.b16 %v48
    %v166 = vunpack.c.h.b16 %v48
    %v167 = vunpack.c.l.b16 %v49
    %v168 = vunpack.c.h.b16 %v49
    %v169 = vunpack.c.l.b16 %v50
    %v170 = vunpack.c.h.b16 %v50
    %v171 = vunpack.c.l.b16 %v51
    %v172 = vpack.c.b16 %v165, %v158
    %v173 = vpack.c.b16 %v166, %v159
    %v174 = vpack.c.b16 %v167, %v160
    %v175 = vpack.c.b16 %v168, %v161
    %v176 = vpack.c.b16 %v169, %v162
    %v177 = vpack.c.b16 %v170, %v163
    %v178 = vpack.c.b16 %v171, %v164
    %v283 = vunpack.c.l.b16 %v52
    %v284 = vunpack.c.l.b16 %v53
    %v285 = vunpack.c.l.b16 %v54
    %v286 = vunpack.c.l.b16 %v55
    %v287 = vunpack.c.l.b16 %v56
    %v288 = vunpack.c.l.b16 %v57
    %v289 = vunpack.c.l.b16 %v58
    %v290 = vunpack.c.l.b16 %v59
    %v291 = vunpack.c.l.b16 %v60
    %v292 = vunpack.c.l.b16 %v61
    %v293 = vunpack.c.l.b16 %v62
    %v294 = vunpack.c.l.b16 %v63
    %v295 = vunpack.c.l.b16 %v64
    %v296 = vunpack.c.l.b16 %v65
    %v297 = vunpack.c.l.b16 %v66
    %v298 = vunpack.c.l.b16 %v67
    %v299 = vunpack.c.l.b16 %v68
    %v300 = vunpack.c.l.b16 %v69
    %v301 = vunpack.c.l.b16 %v70
    %v302 = vunpack.c.l.b16 %v71
    %v303 = vunpack.c.l.b16 %v72
    %v304 = vunpack.c.l.b16 %v73
    %v305 = vunpack.c.l.b16 %v74
    %v306 = vunpack.c.l.b16 %v75
    %v307 = vunpack.c.l.b16 %v76
    %v308 = vunpack.c.l.b16 %v77
    %v309 = vunpack.c.l.b16 %v78
    %v310 = vunpack.c.l.b16 %v79
    %v311 = vunpack.c.l.b16 %v80
    %v312 = vunpack.c.l.b16 %v81
    %v313 = vunpack.c.l.b16 %v82
    %v314 = vunpack.c.l.b16 %v83
    %v315 = vunpack.c.l.b16 %v84
    %v316 = vunpack.c.l.b16 %v85
    %v317 = vunpack.c.l.b16 %v86
    %v318 = vunpack.c.l.b16 %v87
    %v319 = vunpack.c.l.b16 %v88
    %v320 = vunpack.c.l.b16 %v89
    %v321 = vunpack.c.l.b16 %v90
    %v322 = vunpack.c.l.b16 %v91
    %v323 = vunpack.c.l.b16 %v92
    %v324 = vunpack.c.l.b16 %v93
    %v325 = vunpack.c.l.b16 %v94
    %v326 = vunpack.c.l.b16 %v95
    %v327 = vunpack.c.l.b16 %v96
    %v328 = vunpack.c.l.b16 %v97
    %v329 = vunpack.c.l.b16 %v98
    %v330 = vunpack.c.l.b16 %v99
    %v331 = vunpack.c.l.b16 %v100
    %v332 = vunpack.c.l.b16 %v101
    %v333 = vunpack.c.l.b16 %v102
    %v334 = vunpack.c.l.b16 %v103
    %v335 = vunpack.c.l.b16 %v104
    %v336 = vunpack.c.l.b16 %v105
    %v337 = vunpack.c.l.b16 %v106
    %v338 = vunpack.c.l.b16 %v107
    %v339 = vunpack.c.l.b16 %v108
    %v340 = vunpack.c.l.b16 %v109
    %v341 = vunpack.c.l.b16 %v110
    %v342 = vunpack.c.l.b16 %v111
    %v343 = vunpack.c.l.b16 %v112
    %v344 = vunpack.c.l.b16 %v113
    %v345 = vunpack.c.l.b16 %v114
    %v346 = vunpack.c.l.b16 %v115
    %v347 = vunpack.c.l.b16 %v116
    %v348 = vunpack.c.l.b16 %v117
    %v349 = vunpack.c.l.b16 %v118
    %v350 = vunpack.c.l.b16 %v119
    %v351 = vunpack.c.l.b16 %v120
    %v352 = vunpack.c.l.b16 %v121
    %v353 = vunpack.c.l.b16 %v122
    %v354 = vunpack.c.l.b16 %v123
    %v355 = vunpack.c.l.b16 %v124
    %v356 = vunpack.c.l.b16 %v125
    %v357 = vunpack.c.l.b16 %v126
    %v358 = vunpack.c.l.b16 %v127
    %v359 = vunpack.c.l.b16 %v128
    %v360 = vunpack.c.l.b16 %v129
    %v361 = vunpack.c.l.b16 %v130
    %v362 = vunpack.c.l.b16 %v131
    %v363 = vunpack.c.l.b16 %v132
    %v364 = vunpack.c.l.b16 %v133
    %v365 = vunpack.c.l.b16 %v134
    %v366 = vunpack.c.l.b16 %v135
    %v367 = vunpack.c.l.b16 %v136
    %v368 = vunpack.c.l.b16 %v137
    %v369 = vunpack.c.l.b16 %v138
    %v370 = vunpack.c.l.b16 %v139
    %v371 = vunpack.c.l.b16 %v140
    %v372 = vunpack.c.l.b16 %v141
    %v373 = vunpack.c.l.b16 %v142
    %v374 = vunpack.c.l.b16 %v143
    %v375 = vunpack.c.l.b16 %v144
    %v376 = vunpack.c.l.b16 %v145
    %v377 = vunpack.c.l.b16 %v146
    %v378 = vunpack.c.l.b16 %v147
    %v379 = vunpack.c.l.b16 %v148
    %v380 = vunpack.c.l.b16 %v149
    %v381 = vpack.c.b16 %v284, %v283
    %v382 = vpack.c.b16 %v286, %v285
    %v383 = vpack.c.b16 %v288, %v287
    %v384 = vpack.c.b16 %v290, %v289
    %v385 = vpack.c.b16 %v292, %v291
    %v386 = vpack.c.b16 %v294, %v293
    %v387 = vpack.c.b16 %v296, %v295
    %v388 = vpack.c.b16 %v298, %v297
    %v389 = vpack.c.b16 %v300, %v299
    %v390 = vpack.c.b16 %v302, %v301
    %v391 = vpack.c.b16 %v304, %v303
    %v392 = vpack.c.b16 %v306, %v305
    %v393 = vpack.c.b16 %v308, %v307
    %v394 = vpack.c.b16 %v310, %v309
    %v395 = vpack.c.b16 %v312, %v311
    %v396 = vpack.c.b16 %v314, %v313
    %v397 = vpack.c.b16 %v316, %v315
    %v398 = vpack.c.b16 %v318, %v317
    %v399 = vpack.c.b16 %v320, %v319
    %v400 = vpack.c.b16 %v322, %v321
    %v401 = vpack.c.b16 %v324, %v323
    %v402 = vpack.c.b16 %v326, %v325
    %v403 = vpack.c.b16 %v328, %v327
    %v404 = vpack.c.b16 %v330, %v329
    %v405 = vpack.c.b16 %v332, %v331
    %v406 = vpack.c.b16 %v334, %v333
    %v407 = vpack.c.b16 %v336, %v335
    %v408 = vpack.c.b16 %v338, %v337
    %v409 = vpack.c.b16 %v340, %v339
    %v410 = vpack.c.b16 %v342, %v341
    %v411 = vpack.c.b16 %v344, %v343
    %v412 = vpack.c.b16 %v346, %v345
    %v413 = vpack.c.b16 %v348, %v347
    %v414 = vpack.c.b16 %v350, %v349
    %v415 = vpack.c.b16 %v352, %v351
    %v416 = vpack.c.b16 %v354, %v353
    %v417 = vpack.c.b16 %v356, %v355
    %v418 = vpack.c.b16 %v358, %v357
    %v419 = vpack.c.b16 %v360, %v359
    %v420 = vpack.c.b16 %v362, %v361
    %v421 = vpack.c.b16 %v364, %v363
    %v422 = vpack.c.b16 %v366, %v365
    %v423 = vpack.c.b16 %v368, %v367
    %v424 = vpack.c.b16 %v370, %v369
    %v425 = vpack.c.b16 %v372, %v371
    %v426 = vpack.c.b16 %v374, %v373
    %v427 = vpack.c.b16 %v376, %v375
    %v428 = vpack.c.b16 %v378, %v377
    %v429 = vpack.c.b16 %v380, %v379
    %vm479 = vcmask 130048
    %v481 = vsel %vm479, %v178, 0
    %483 = vmatprep.subr.bf16.mxu0 0
    %484 = vmatpush1.bf16.msra.mxu0 %v381
    %485 = vmatprep.subr.bf16.mxu0 0
    %486 = vmatpush1.bf16.msra.mxu0 %v382
    %487 = vmatprep.subr.bf16.mxu0 0
    %488 = vmatpush1.bf16.msra.mxu0 %v383
    %489 = vmatprep.subr.bf16.mxu0 0
    %490 = vmatpush1.bf16.msra.mxu0 %v384
    %491 = vmatprep.subr.bf16.mxu0 0
    %492 = vmatpush1.bf16.msra.mxu0 %v385
    %493 = vmatprep.subr.bf16.mxu0 0
    %494 = vmatpush1.bf16.msra.mxu0 %v386
    %495 = vmatprep.subr.bf16.mxu0 0
    %496 = vmatpush1.bf16.msra.mxu0 %v387
    %497 = vmatprep.subr.bf16.mxu0 0
    %498 = vmatpush1.bf16.msra.mxu0 %v388
    %499 = vmatprep.subr.bf16.mxu0 0
    %500 = vmatpush1.bf16.msra.mxu0 %v389
    %501 = vmatprep.subr.bf16.mxu0 0
    %502 = vmatpush1.bf16.msra.mxu0 %v390
    %503 = vmatprep.subr.bf16.mxu0 0
    %504 = vmatpush1.bf16.msra.mxu0 %v391
    %505 = vmatprep.subr.bf16.mxu0 0
    %506 = vmatpush1.bf16.msra.mxu0 %v392
    %507 = vmatprep.subr.bf16.mxu0 0
    %508 = vmatpush1.bf16.msra.mxu0 %v393
    %509 = vmatprep.subr.bf16.mxu0 0
    %510 = vmatpush1.bf16.msra.mxu0 %v394
    %511 = vmatprep.subr.bf16.mxu0 0
    %512 = vmatpush1.bf16.msra.mxu0 %v395
    %513 = vmatprep.subr.bf16.mxu0 0
    %514 = vmatpush1.bf16.msra.mxu0 %v396
    %515 = vmatprep.mubr.bf16.mxu0 %v173
    %516 = vmatmul.mubr.bf16.gmra.mrb[0].mxu0 %v172
    %v517 = vpop.f32.mrb[0].mxu0
    %v518 = vadd.f32 0.0, %v517
    %v519 = vpop.f32.mrb[0].mxu0
    %v520 = vpop.f32.mrb[0].mxu0
    %v521 = vadd.f32 0.0, %v520
    %v522 = vpop.f32.mrb[0].mxu0
    %523 = vdwg.mxu0
    %524 = vmatprep.subr.bf16.mxu0 0
    %525 = vmatpush1.bf16.msra.mxu0 %v397
    %526 = vmatprep.subr.bf16.mxu0 0
    %527 = vmatpush1.bf16.msra.mxu0 %v398
    %528 = vmatprep.subr.bf16.mxu0 0
    %529 = vmatpush1.bf16.msra.mxu0 %v399
    %530 = vmatprep.subr.bf16.mxu0 0
    %531 = vmatpush1.bf16.msra.mxu0 %v400
    %532 = vmatprep.subr.bf16.mxu0 0
    %533 = vmatpush1.bf16.msra.mxu0 %v401
    %534 = vmatprep.subr.bf16.mxu0 0
    %535 = vmatpush1.bf16.msra.mxu0 %v402
    %536 = vmatprep.subr.bf16.mxu0 0
    %537 = vmatpush1.bf16.msra.mxu0 %v403
    %538 = vmatprep.subr.bf16.mxu0 0
    %539 = vmatpush1.bf16.msra.mxu0 %v404
    %540 = vmatprep.subr.bf16.mxu0 0
    %541 = vmatpush1.bf16.msra.mxu0 %v405
    %542 = vmatprep.subr.bf16.mxu0 0
    %543 = vmatpush1.bf16.msra.mxu0 %v406
    %544 = vmatprep.subr.bf16.mxu0 0
    %545 = vmatpush1.bf16.msra.mxu0 %v407
    %546 = vmatprep.subr.bf16.mxu0 0
    %547 = vmatpush1.bf16.msra.mxu0 %v408
    %548 = vmatprep.subr.bf16.mxu0 0
    %549 = vmatpush1.bf16.msra.mxu0 %v409
    %550 = vmatprep.subr.bf16.mxu0 0
    %551 = vmatpush1.bf16.msra.mxu0 %v410
    %552 = vmatprep.subr.bf16.mxu0 0
    %553 = vmatpush1.bf16.msra.mxu0 %v411
    %554 = vmatprep.subr.bf16.mxu0 0
    %555 = vmatpush1.bf16.msra.mxu0 %v412
    %556 = vmatprep.mubr.bf16.mxu0 %v175
    %557 = vmatmul.mubr.bf16.gmra.mrb[0].mxu0 %v174
    %v558 = vpop.f32.mrb[0].mxu0
    %v559 = vadd.f32 %v518, %v558
    %v560 = vpop.f32.mrb[0].mxu0
    %v561 = vpop.f32.mrb[0].mxu0
    %v562 = vadd.f32 %v521, %v561
    %v563 = vpop.f32.mrb[0].mxu0
    %564 = vdwg.mxu0
    %565 = vmatprep.subr.bf16.mxu0 0
    %566 = vmatpush1.bf16.msra.mxu0 %v413
    %567 = vmatprep.subr.bf16.mxu0 0
    %568 = vmatpush1.bf16.msra.mxu0 %v414
    %569 = vmatprep.subr.bf16.mxu0 0
    %570 = vmatpush1.bf16.msra.mxu0 %v415
    %571 = vmatprep.subr.bf16.mxu0 0
    %572 = vmatpush1.bf16.msra.mxu0 %v416
    %573 = vmatprep.subr.bf16.mxu0 0
    %574 = vmatpush1.bf16.msra.mxu0 %v417
    %575 = vmatprep.subr.bf16.mxu0 0
    %576 = vmatpush1.bf16.msra.mxu0 %v418
    %577 = vmatprep.subr.bf16.mxu0 0
    %578 = vmatpush1.bf16.msra.mxu0 %v419
    %579 = vmatprep.subr.bf16.mxu0 0
    %580 = vmatpush1.bf16.msra.mxu0 %v420
    %581 = vmatprep.subr.bf16.mxu0 0
    %582 = vmatpush1.bf16.msra.mxu0 %v421
    %583 = vmatprep.subr.bf16.mxu0 0
    %584 = vmatpush1.bf16.msra.mxu0 %v422
    %585 = vmatprep.subr.bf16.mxu0 0
    %586 = vmatpush1.bf16.msra.mxu0 %v423
    %587 = vmatprep.subr.bf16.mxu0 0
    %588 = vmatpush1.bf16.msra.mxu0 %v424
    %589 = vmatprep.subr.bf16.mxu0 0
    %590 = vmatpush1.bf16.msra.mxu0 %v425
    %591 = vmatprep.subr.bf16.mxu0 0
    %592 = vmatpush1.bf16.msra.mxu0 %v426
    %593 = vmatprep.subr.bf16.mxu0 0
    %594 = vmatpush1.bf16.msra.mxu0 %v427
    %595 = vmatprep.subr.bf16.mxu0 0
    %596 = vmatpush1.bf16.msra.mxu0 %v428
    %597 = vmatprep.mubr.bf16.mxu0 %v177
    %598 = vmatmul.mubr.bf16.gmra.mrb[0].mxu0 %v176
    %v599 = vpop.f32.mrb[0].mxu0
    %v600 = vadd.f32 %v559, %v599
    %v601 = vpop.f32.mrb[0].mxu0
    %v602 = vpop.f32.mrb[0].mxu0
    %v603 = vadd.f32 %v562, %v602
    %v604 = vpop.f32.mrb[0].mxu0
    %605 = vdwg.mxu0
    %606 = vmatprep.subr.bf16.mxu0 0
    %607 = vmatpush1.bf16.msra.mxu0 %v429
    %608 = vmatprep.subr.bf16.mxu0 0
    %609 = vmatpush1.bf16.msra.mxu0 0
    %610 = vmatprep.subr.bf16.mxu0 0
    %611 = vmatpush1.bf16.msra.mxu0 0
    %612 = vmatprep.subr.bf16.mxu0 0
    %613 = vmatpush1.bf16.msra.mxu0 0
    %614 = vmatprep.subr.bf16.mxu0 0
    %615 = vmatpush1.bf16.msra.mxu0 0
    %616 = vmatprep.subr.bf16.mxu0 0
    %617 = vmatpush1.bf16.msra.mxu0 0
    %618 = vmatprep.subr.bf16.mxu0 0
    %619 = vmatpush1.bf16.msra.mxu0 0
    %620 = vmatprep.subr.bf16.mxu0 0
    %621 = vmatpush1.bf16.msra.mxu0 0
    %622 = vmatprep.subr.bf16.mxu0 0
    %623 = vmatpush1.bf16.msra.mxu0 0
    %624 = vmatprep.subr.bf16.mxu0 0
    %625 = vmatpush1.bf16.msra.mxu0 0
    %626 = vmatprep.subr.bf16.mxu0 0
    %627 = vmatpush1.bf16.msra.mxu0 0
    %628 = vmatprep.subr.bf16.mxu0 0
    %629 = vmatpush1.bf16.msra.mxu0 0
    %630 = vmatprep.subr.bf16.mxu0 0
    %631 = vmatpush1.bf16.msra.mxu0 0
    %632 = vmatprep.subr.bf16.mxu0 0
    %633 = vmatpush1.bf16.msra.mxu0 0
    %634 = vmatprep.subr.bf16.mxu0 0
    %635 = vmatpush1.bf16.msra.mxu0 0
    %636 = vmatprep.subr.bf16.mxu0 0
    %637 = vmatpush1.bf16.msra.mxu0 0
    %638 = vmatprep.mubr.bf16.mxu0 0
    %639 = vmatmul.mubr.bf16.gmra.mrb[0].mxu0 %v481
    %v640 = vpop.f32.mrb[0].mxu0
    %v641 = vadd.f32 %v600, %v640
    %v642 = vpop.f32.mrb[0].mxu0
    %v643 = vpop.f32.mrb[0].mxu0
    %v644 = vadd.f32 %v603, %v643
    %v645 = vpop.f32.mrb[0].mxu0
    %646 = vdwg.mxu0
    %v647 = vmul.f32 %v641, 0.5
    %v648 = vmul.f32 %v644, 0.5
    %vm649 = vcmp.ge.f32.partialorder %v647, 1.0
    %vm650 = vcmp.ge.f32.partialorder %v648, 1.0
    %v651 = vsel %vm649, 1, 0
    %v652 = vsel %vm650, 1, 0
    %v653 = vcvt.s32.f32 %v651
    %v654 = vcvt.s32.f32 %v652
    %v655 = vpack.c.bf16 %v654, %v653
    %v657 = vunpack.c.l.b16 %v655
    %v658 = vunpack.c.h.b16 %v655
    %v659 = vpack.c.b16 %v657, %v657
    %v660 = vpack.c.b16 %v658, %v658
    %vm663 = vcmask 125952
    %664 = vst.msk [vmem:[#allocation7] sm:$0xf] %vm663, %v659
    %665 = vst.msk [vmem:[#allocation7 + $0x4] sm:$0xf] %vm663, %v660
    %v666 = vsel %vm649, 0.0, %v647
    %v667 = vsel %vm650, 0.0, %v648
    %668 = vst.msk [vmem:[#allocation8] sm:$0xff] %vm479, %v666
    %669 = vst.msk [vmem:[#allocation8 + $0x8] sm:$0xff] %vm479, %v667
    // Predicated region
    $region18: #{tpu_custom_call.1} parent=1 // pred_check
      _
    $region19: #{tpu_custom_call.1} parent=1 // pred_check_branch
      %671 = sbr.rel (0) target = $region21
    $region20: #{tpu_custom_call.1} parent=1 // pred_region
      %s673 = ssub.s32 128, 128
      %674 = vsyncadd [#allocation4], %s673
      %s675 = sshll.u32 [#allocation7], 4
      %s676 = int_to_ptr.vmem [resolvable:$true] %s675
      %681 = dma.vmem_to_hbm [thread:$0]  %s676, 128, %s2, [#allocation4], 64, 64, 4
    $region21: #{tpu_custom_call.1} parent=1 // pred_fallthru
      _
    // Predicated region
    $region22: #{tpu_custom_call.1} parent=1 // pred_check
      _
    $region23: #{tpu_custom_call.1} parent=1 // pred_check_branch
      %683 = sbr.rel (0) target = $region25
    $region24: #{tpu_custom_call.1} parent=1 // pred_region
      %s685 = ssub.s32 256, 256
      %686 = vsyncadd [#allocation9], %s685
      %s687 = sshll.u32 [#allocation8], 4
      %s688 = int_to_ptr.vmem [resolvable:$true] %s687
      %693 = dma.vmem_to_hbm [thread:$0]  %s688, 256, %s3, [#allocation9], 128, 128, 8
    $region25: #{tpu_custom_call.1} parent=1 // pred_fallthru
      _
    // Predicated region
    $region26: #{tpu_custom_call.1} parent=1 // pred_check
      _
    $region27: #{tpu_custom_call.1} parent=1 // pred_check_branch
      %695 = sbr.rel (0) target = $region29
    $region28: #{tpu_custom_call.1} parent=1 // pred_region
      %696 = dma.done [#allocation4], 128
    $region29: #{tpu_custom_call.1} parent=1 // pred_fallthru
      _
    // Predicated region
    $region30: #{tpu_custom_call.1} parent=1 // pred_check
      _
    $region31: #{tpu_custom_call.1} parent=1 // pred_check_branch
      %698 = sbr.rel (0) target = $region33
    $region32: #{tpu_custom_call.1} parent=1 // pred_region
      %699 = dma.done [#allocation9], 256
    $region33: #{tpu_custom_call.1} parent=1 // pred_fallthru
      _
    %700 = vsyncpa [#allocation3], 1
    %701 = vsyncpa [#allocation6], 1
    %702 = vsyncpa [#allocation4], 1
    %703 = vsyncpa [#allocation9], 1

</llo_original>
